<compile_context>
chip_gen: v7x
topology: tpu7x:2x2x1
jax: 0.10.0
libtpu: 0.0.40
codegen_flags: <defaults>
</compile_context>

<pallas_src>
import functools

import jax
import jax.numpy as jnp
from jax.experimental import pallas as pl
from jax.experimental.pallas import tpu as pltpu


def _round_up(x, m):
    return ((x + m - 1) // m) * m


def _gen_config():
    """Per-generation defaults: (max_tile_b, vmem_limit_bytes, bf16_tanh)."""
    kind = ""
    try:
        kind = jax.devices()[0].device_kind.lower()
    except Exception:
        pass
    is_v7 = ("v7" in kind) or ("7x" in kind)
    has_bf16_eup = ("v6" in kind) or is_v7
    max_tile_b = 4096 if is_v7 else 8192          # v7x: 64 MiB VMEM -> smaller cap
    vmem_limit = (32 << 20) if is_v7 else (48 << 20)
    return max_tile_b, vmem_limit, has_bf16_eup


def _pick_tile(B, tile_b, n_split=2):
    """Pick (tile, num_tiles).

    If more than one tile, the tile is a multiple of 128 (lane-dense output blocks;
    the partial tail block is clipped/masked by Pallas). Small batches use a single
    full-extent block (always legal: block dims equal the array dims).
    Splitting into >= n_split tiles lets ("parallel",) use both TCs on v7x.
    """
    tile_b = max(128, (tile_b // 128) * 128)
    if B < n_split * 128:
        return B, 1
    target = min(tile_b, _round_up(pl.cdiv(B, n_split), 128))
    tb = max(128, (target // 128) * 128)
    return tb, pl.cdiv(B, tb)


def contrastive_kernel(z0_ref, z1_ref, w1a_ref, w1b_ref, b1_ref, w2_ref, b2_ref,
                       o_ref, *, use_bf16_tanh):
    """One batch tile.

    z0_ref, z1_ref   : (TILE_B, L)  latent tiles (batch on sublanes)
    w1a_ref, w1b_ref : (H, L)       transposed halves of W1 (resident)
    b1_ref, w2_ref   : (H, 1)       hidden bias / output weights as columns (resident)
    b2_ref           : (1, 1) SMEM  output bias scalar
    o_ref            : (1, TILE_B)  lane-dense sigmoid output (batch on lanes)
    """
    # Hidden layer computed transposed: (H, TILE_B) = W1a^T z0^T + W1b^T z1^T + b1.
    pre = (
        jnp.einsum("hl,bl->hb", w1a_ref[...], z0_ref[...],
                   preferred_element_type=jnp.float32)
        + jnp.einsum("hl,bl->hb", w1b_ref[...], z1_ref[...],
                     preferred_element_type=jnp.float32)
        + b1_ref[...]
    )
    if use_bf16_tanh:
        # v6e/v7x: bf16 EUP tanh doubles transcendental throughput; f32 accumulate.
        h = jnp.tanh(pre.astype(jnp.bfloat16))                       # (H, TILE_B)
        prod = (h * w2_ref[...].astype(jnp.bfloat16)).astype(jnp.float32)
    else:
        h = jnp.tanh(pre)                                            # (H, TILE_B)
        prod = h * w2_ref[...]
    # Output layer (32 -> 1): VPU multiply + sublane reduce, not an N=1 matmul.
    logit = jnp.sum(prod, axis=0, keepdims=True) + b2_ref[0, 0]
    o_ref[...] = jax.nn.sigmoid(logit)                               # (1, TILE_B)


def contrastive_net(z0, z1, w1, b1, w2, b2, *, tile_b=None, use_bf16_tanh=None):
    """Forward pass of ContrastiveNet. Returns shape (B,) (like torch .squeeze())."""
    B, L = z0.shape
    in_dim, H = w1.shape
    assert in_dim == 2 * L and z1.shape == (B, L)

    max_tile_b, vmem_limit, bf16_default = _gen_config()
    if tile_b is None:
        tile_b = max_tile_b
    if use_bf16_tanh is None:
        use_bf16_tanh = bf16_default

    tb, num_tiles = _pick_tile(B, tile_b)

    # Weight prep (tiny, one-off): split + transpose W1, column-ize b1/w2.
    w1a_t = jnp.asarray(w1[:L, :].T, jnp.float32)        # (H, L)
    w1b_t = jnp.asarray(w1[L:, :].T, jnp.float32)        # (H, L)
    b1_col = jnp.asarray(b1, jnp.float32).reshape(H, 1)
    w2_col = jnp.asarray(w2, jnp.float32).reshape(H, 1)
    b2_s = jnp.asarray(b2, jnp.float32).reshape(1, 1)

    resident = lambda shape: pl.BlockSpec(shape, lambda i: (0, 0))

    out = pl.pallas_call(
        functools.partial(contrastive_kernel, use_bf16_tanh=use_bf16_tanh),
        out_shape=jax.ShapeDtypeStruct((1, B), jnp.float32),
        grid=(num_tiles,),
        in_specs=[
            pl.BlockSpec((tb, L), lambda i: (i, 0)),            # z0 batch tile
            pl.BlockSpec((tb, L), lambda i: (i, 0)),            # z1 batch tile
            resident((H, L)),                                   # W1[:L].T (resident)
            resident((H, L)),                                   # W1[L:].T (resident)
            resident((H, 1)),                                   # b1 column (resident)
            resident((H, 1)),                                   # w2 column (resident)
            pl.BlockSpec(memory_space=pltpu.MemorySpace.SMEM),  # b2 scalar
        ],
        out_specs=pl.BlockSpec((1, tb), lambda i: (0, i)),
        compiler_params=pltpu.CompilerParams(
            dimension_semantics=("parallel",),
            vmem_limit_bytes=vmem_limit,
        ),
    )(z0, z1, w1a_t, w1b_t, b1_col, w2_col, b2_s)

    return out[0]


def init_params(key, n_latent_dims=4, n_units_per_layer=32):
    """Deterministic init mimicking torch.nn.Linear default (uniform +-1/sqrt(fan_in))."""
    k1, k2, k3, k4 = jax.random.split(key, 4)
    in_dim = 2 * n_latent_dims
    bound1 = 1.0 / jnp.sqrt(in_dim)
    bound2 = 1.0 / jnp.sqrt(n_units_per_layer)
    w1 = jax.random.uniform(k1, (in_dim, n_units_per_layer), jnp.float32,
                            -bound1, bound1)
    b1 = jax.random.uniform(k2, (n_units_per_layer,), jnp.float32,
                            -bound1, bound1)
    w2 = jax.random.uniform(k3, (n_units_per_layer, 1), jnp.float32,
                            -bound2, bound2)
    b2 = jax.random.uniform(k4, (1,), jnp.float32, -bound2, bound2)
    return w1, b1, w2, b2


if __name__ == "__main__":
    n_latent_dims = 4
    n_units = 32

    key = jax.random.PRNGKey(0)
    kz0, kz1, kparams = jax.random.split(key, 3)
    w1, b1, w2, b2 = init_params(kparams, n_latent_dims, n_units)

    def reference(z0, z1):
        x = jnp.concatenate([z0, z1], axis=-1)
        return jax.nn.sigmoid(jnp.tanh(x @ w1 + b1) @ w2 + b2)[:, 0]

    # Exact (f32) check, single full-extent block.
    B = 8
    z0 = jax.random.normal(kz0, (B, n_latent_dims), jnp.float32)
    z1 = jax.random.normal(kz1, (B, n_latent_dims), jnp.float32)
    fakes = contrastive_net(z0, z1, w1, b1, w2, b2, use_bf16_tanh=False)
    jax.block_until_ready(fakes)
    assert fakes.shape == (B,)
    assert jnp.allclose(fakes, reference(z0, z1), atol=1e-5, rtol=1e-5)

    # Multi-tile path with ragged tail and NO input padding: tb=256, grid=cdiv(300,256)=2,
    # partial last block clipped/masked by Pallas.
    B2 = 300
    kz2, kz3 = jax.random.split(kz0)
    z0b = jax.random.normal(kz2, (B2, n_latent_dims), jnp.float32)
    z1b = jax.random.normal(kz3, (B2, n_latent_dims), jnp.float32)
    fakes2 = contrastive_net(z0b, z1b, w1, b1, w2, b2, use_bf16_tanh=False)
    jax.block_until_ready(fakes2)
    assert fakes2.shape == (B2,)
    assert jnp.allclose(fakes2, reference(z0b, z1b), atol=1e-5, rtol=1e-5)

    # Auto (generation-tuned) path: exercises bf16 tanh on v6e/v7x (looser tolerance),
    # f32 on v5e and older.
    fakes3 = contrastive_net(z0b, z1b, w1, b1, w2, b2)
    jax.block_until_ready(fakes3)
    assert fakes3.shape == (B2,)
    assert jnp.allclose(fakes3, reference(z0b, z1b), atol=5e-2, rtol=0.0)

    print("KERNEL_OK")
</pallas_src>

<mosaic_0001>
module attributes {stable_mosaic.version = 11 : i64} {
  func.func @contrastive_kernel(%arg0: i32, %arg1: memref<8x4xf32, #tpu.memory_space<vmem>>, %arg2: memref<8x4xf32, #tpu.memory_space<vmem>>, %arg3: memref<32x4xf32, #tpu.memory_space<vmem>>, %arg4: memref<32x4xf32, #tpu.memory_space<vmem>>, %arg5: memref<32x1xf32, #tpu.memory_space<vmem>>, %arg6: memref<32x1xf32, #tpu.memory_space<vmem>>, %arg7: memref<1x1xf32, #tpu.memory_space<smem>>, %arg8: memref<1x8xf32, #tpu.memory_space<vmem>>) attributes {dimension_semantics = [#tpu.dimension_semantics<parallel>], iteration_bounds = array<i64: 1>, scalar_prefetch = 0 : i64, scratch_operands = 0 : i64, tpu.core_type = #tpu.core_type<tc>, window_params = [{transform_indices = @transform_0, window_bounds = array<i64: 8, 4>}, {transform_indices = @transform_1, window_bounds = array<i64: 8, 4>}, {pipeline_mode = #tpu.pipeline_mode<synchronous>, transform_indices = @transform_2, window_bounds = array<i64: 32, 4>}, {pipeline_mode = #tpu.pipeline_mode<synchronous>, transform_indices = @transform_3, window_bounds = array<i64: 32, 4>}, {pipeline_mode = #tpu.pipeline_mode<synchronous>, transform_indices = @transform_4, window_bounds = array<i64: 32, 1>}, {pipeline_mode = #tpu.pipeline_mode<synchronous>, transform_indices = @transform_5, window_bounds = array<i64: 32, 1>}, {transform_indices = @transform_6, window_bounds = array<i64: 1, 1>}, {transform_indices = @transform_7, window_bounds = array<i64: 1, 8>}]} {
    %c0 = arith.constant 0 : index
    %c0_0 = arith.constant 0 : index
    %0 = vector.load %arg3[%c0, %c0_0] : memref<32x4xf32, #tpu.memory_space<vmem>>, vector<32x4xf32>
    %c0_1 = arith.constant 0 : index
    %c0_2 = arith.constant 0 : index
    %1 = vector.load %arg1[%c0_1, %c0_2] : memref<8x4xf32, #tpu.memory_space<vmem>>, vector<8x4xf32>
    "tpu.trace_start"() <{level = 10 : i32, message = "hl,bl->hb"}> : () -> ()
    %cst = arith.constant dense<0.000000e+00> : vector<32x8xf32>
    %2 = tpu.matmul %0, %1, %cst {dimension_numbers = #tpu.dot_dimension_numbers<[1], [1], [0], [0], [0, 0, 1, 0], [], []>} : vector<32x4xf32>, vector<8x4xf32>, vector<32x8xf32> -> vector<32x8xf32>
    "tpu.trace_stop"() : () -> ()
    %c0_3 = arith.constant 0 : index
    %c0_4 = arith.constant 0 : index
    %3 = vector.load %arg4[%c0_3, %c0_4] : memref<32x4xf32, #tpu.memory_space<vmem>>, vector<32x4xf32>
    %c0_5 = arith.constant 0 : index
    %c0_6 = arith.constant 0 : index
    %4 = vector.load %arg2[%c0_5, %c0_6] : memref<8x4xf32, #tpu.memory_space<vmem>>, vector<8x4xf32>
    "tpu.trace_start"() <{level = 10 : i32, message = "hl,bl->hb"}> : () -> ()
    %cst_7 = arith.constant dense<0.000000e+00> : vector<32x8xf32>
    %5 = tpu.matmul %3, %4, %cst_7 {dimension_numbers = #tpu.dot_dimension_numbers<[1], [1], [0], [0], [0, 0, 1, 0], [], []>} : vector<32x4xf32>, vector<8x4xf32>, vector<32x8xf32> -> vector<32x8xf32>
    "tpu.trace_stop"() : () -> ()
    %6 = arith.addf %2, %5 : vector<32x8xf32>
    %c0_8 = arith.constant 0 : index
    %c0_9 = arith.constant 0 : index
    %7 = vector.load %arg5[%c0_8, %c0_9] : memref<32x1xf32, #tpu.memory_space<vmem>>, vector<32x1xf32>
    %8 = vector.broadcast %7 : vector<32x1xf32> to vector<32x8xf32>
    %9 = arith.addf %6, %8 : vector<32x8xf32>
    %10 = math.tanh %9 : vector<32x8xf32>
    %c0_10 = arith.constant 0 : index
    %c0_11 = arith.constant 0 : index
    %11 = vector.load %arg6[%c0_10, %c0_11] : memref<32x1xf32, #tpu.memory_space<vmem>>, vector<32x1xf32>
    %12 = vector.broadcast %11 : vector<32x1xf32> to vector<32x8xf32>
    %13 = arith.mulf %10, %12 : vector<32x8xf32>
    %cst_12 = arith.constant dense<0.000000e+00> : vector<8xf32>
    %14 = vector.multi_reduction <add>, %13, %cst_12 [0] : vector<32x8xf32> to vector<8xf32>
    %15 = vector.shape_cast %14 : vector<8xf32> to vector<1x8xf32>
    %c0_13 = arith.constant 0 : index
    %c0_14 = arith.constant 0 : index
    %16 = memref.load %arg7[%c0_13, %c0_14] : memref<1x1xf32, #tpu.memory_space<smem>>
    %17 = vector.broadcast %16 : f32 to vector<1x8xf32>
    %18 = arith.addf %15, %17 : vector<1x8xf32>
    %19 = arith.negf %18 : vector<1x8xf32>
    %20 = math.exp %19 : vector<1x8xf32>
    %cst_15 = arith.constant 1.000000e+00 : f32
    %21 = vector.broadcast %cst_15 : f32 to vector<1x8xf32>
    %22 = arith.addf %21, %20 : vector<1x8xf32>
    %23 = arith.divf %21, %22 : vector<1x8xf32>
    %c0_16 = arith.constant 0 : index
    %c0_17 = arith.constant 0 : index
    %24 = vector.load %arg8[%c0_16, %c0_17] : memref<1x8xf32, #tpu.memory_space<vmem>>, vector<1x8xf32>
    tpu.vector_store %arg8[%c0_16, %c0_17], %23 {strides = array<i32>} : memref<1x8xf32, #tpu.memory_space<vmem>>, vector<1x8xf32>,
    return
  }
  func.func @transform_0(%arg0: i32) -> (i32, i32) {
    %c0_i32 = arith.constant 0 : i32
    %c0_i32_0 = arith.constant 0 : i32
    return %arg0, %c0_i32 : i32, i32
  }
  func.func @transform_1(%arg0: i32) -> (i32, i32) {
    %c0_i32 = arith.constant 0 : i32
    %c0_i32_0 = arith.constant 0 : i32
    return %arg0, %c0_i32 : i32, i32
  }
  func.func @transform_2(%arg0: i32) -> (i32, i32) {
    %c0_i32 = arith.constant 0 : i32
    %c0_i32_0 = arith.constant 0 : i32
    %c0_i32_1 = arith.constant 0 : i32
    return %c0_i32, %c0_i32_0 : i32, i32
  }
  func.func @transform_3(%arg0: i32) -> (i32, i32) {
    %c0_i32 = arith.constant 0 : i32
    %c0_i32_0 = arith.constant 0 : i32
    %c0_i32_1 = arith.constant 0 : i32
    return %c0_i32, %c0_i32_0 : i32, i32
  }
  func.func @transform_4(%arg0: i32) -> (i32, i32) {
    %c0_i32 = arith.constant 0 : i32
    %c0_i32_0 = arith.constant 0 : i32
    %c0_i32_1 = arith.constant 0 : i32
    return %c0_i32, %c0_i32_0 : i32, i32
  }
  func.func @transform_5(%arg0: i32) -> (i32, i32) {
    %c0_i32 = arith.constant 0 : i32
    %c0_i32_0 = arith.constant 0 : i32
    %c0_i32_1 = arith.constant 0 : i32
    return %c0_i32, %c0_i32_0 : i32, i32
  }
  func.func @transform_6(%arg0: i32) -> (i32, i32) {
    %c0_i32 = arith.constant 0 : i32
    %c0_i32_0 = arith.constant 0 : i32
    %c0_i32_1 = arith.constant 0 : i32
    return %c0_i32, %c0_i32_0 : i32, i32
  }
  func.func @transform_7(%arg0: i32) -> (i32, i32) {
    %c0_i32 = arith.constant 0 : i32
    %c0_i32_0 = arith.constant 0 : i32
    return %c0_i32, %arg0 : i32, i32
  }
}

</mosaic_0001>

<llo_original>
// kernel: tpu_custom_call.1
$region0: #{tpu_custom_call.1}
  #allocation0 [shape = 'u32[]', space=smem, size = 0x4, offset = 0x4, fixed_abs, tag = 'smem constant byte address 0x4 - core index']
  #allocation1 [shape = 'u32[144,128]{1,0:T(1,128)}', space=vmem, size = 0x12000, scoped, tag = 'internal scratch']
  #allocation2 [shape = 'f32[1,1]{1,0:T(1,128)S(6)}', space=smem, size = 0x200, scoped, tag = 'scoped memory for tpu_custom_call.1']
  %s0 = inlined_call_operand.vmem [shape: f32[8,4], index: 0, kind: input, shape index: {}]
  %s1 = inlined_call_operand.vmem [shape: f32[8,4], index: 1, kind: input, shape index: {}]
  %s2 = inlined_call_operand.vmem [shape: f32[32,4], index: 2, kind: input, shape index: {}]
  %s3 = inlined_call_operand.vmem [shape: f32[32,4], index: 3, kind: input, shape index: {}]
  %s4 = inlined_call_operand.vmem [shape: f32[32,1], index: 4, kind: input, shape index: {}]
  %s5 = inlined_call_operand.vmem [shape: f32[32,1], index: 5, kind: input, shape index: {}]
  %s6 = inlined_call_operand.<no memory space> [shape: f32[1,1], index: 6, kind: input, shape index: {}]
  %s7 = inlined_call_operand.hbm [shape: f32[1,8], index: 7, kind: output, shape index: {}]
  %s8 = sld [smem:[#allocation0]]
  $region38: #{tpu_custom_call.1} parent=0
    _
  %s10 = ssub.s32 1, %s8
  %s11 = scalar_select 0, %s10, %s8
  %12 = sst [smem:[#allocation2]] %s6
  $region1: #{tpu_custom_call.1} parent=0
    #allocation3 [shape = 'u8[512]{0}', space=vmem, size = 0x400, scoped, tag = 'output window, operand 0, single buffered']
    #allocation4 [shape = 's32[1]{0}', space=sflag, size = 0x4, scoped, tag = 'scoped memory for tpu_custom_call.1']
    %13 = vsyncpa [#allocation4], 0
    // Predicated region
    $region2: #{tpu_custom_call.1} parent=1 // pred_check
      _
    $region3: #{tpu_custom_call.1} parent=1 // pred_check_branch
      %15 = sbr.rel (0) target = $region5
    $region4: #{tpu_custom_call.1} parent=1 // pred_region
      _
    $region5: #{tpu_custom_call.1} parent=1 // pred_fallthru
      _
    // Predicated region
    $region6: #{tpu_custom_call.1} parent=1 // pred_check
      _
    $region7: #{tpu_custom_call.1} parent=1 // pred_check_branch
      %17 = sbr.rel (0) target = $region9
    $region8: #{tpu_custom_call.1} parent=1 // pred_region
      _
    $region9: #{tpu_custom_call.1} parent=1 // pred_fallthru
      _
    // Predicated region
    $region10: #{tpu_custom_call.1} parent=1 // pred_check
      _
    $region11: #{tpu_custom_call.1} parent=1 // pred_check_branch
      %19 = sbr.rel (0) target = $region13
    $region12: #{tpu_custom_call.1} parent=1 // pred_region
      _
    $region13: #{tpu_custom_call.1} parent=1 // pred_fallthru
      _
    // Predicated region
    $region14: #{tpu_custom_call.1} parent=1 // pred_check
      _
    $region15: #{tpu_custom_call.1} parent=1 // pred_check_branch
      %21 = sbr.rel (0) target = $region17
    $region16: #{tpu_custom_call.1} parent=1 // pred_region
      _
    $region17: #{tpu_custom_call.1} parent=1 // pred_fallthru
      _
    // Predicated region
    $region18: #{tpu_custom_call.1} parent=1 // pred_check
      _
    $region19: #{tpu_custom_call.1} parent=1 // pred_check_branch
      %23 = sbr.rel (0) target = $region21
    $region20: #{tpu_custom_call.1} parent=1 // pred_region
      _
    $region21: #{tpu_custom_call.1} parent=1 // pred_fallthru
      _
    // Predicated region
    $region22: #{tpu_custom_call.1} parent=1 // pred_check
      _
    $region23: #{tpu_custom_call.1} parent=1 // pred_check_branch
      %25 = sbr.rel (0) target = $region25
    $region24: #{tpu_custom_call.1} parent=1 // pred_region
      _
    $region25: #{tpu_custom_call.1} parent=1 // pred_fallthru
      _
    // Predicated region
    $region26: #{tpu_custom_call.1} parent=1 // pred_check
      _
    $region27: #{tpu_custom_call.1} parent=1 // pred_check_branch
      %27 = sbr.rel (0) target = $region29
    $region28: #{tpu_custom_call.1} parent=1 // pred_region
      _
    $region29: #{tpu_custom_call.1} parent=1 // pred_fallthru
      _
    %v28 = vld [vmem:[%s2] sm:$0xff]
    %v29 = vld [vmem:[%s2 + $0x8] sm:$0xff]
    %v30 = vld [vmem:[%s2 + $0x10] sm:$0xff]
    %v31 = vld [vmem:[%s2 + $0x18] sm:$0xff]
    %v32 = vld [vmem:[%s0] sm:$0xff]
    %v33 = vld [vmem:[%s3] sm:$0xff]
    %v34 = vld [vmem:[%s3 + $0x8] sm:$0xff]
    %v35 = vld [vmem:[%s3 + $0x10] sm:$0xff]
    %v36 = vld [vmem:[%s3 + $0x18] sm:$0xff]
    %v37 = vld [vmem:[%s1] sm:$0xff]
    %vm38 = vcmask 31744
    %v40 = vsel %vm38, %v33, 0
    %v43 = vsel %vm38, %v34, 0
    %v46 = vsel %vm38, %v35, 0
    %v49 = vsel %vm38, %v36, 0
    %v52 = vsel %vm38, %v37, 0
    %54 = vmatprep.subr.mxu0 0.0
    %55 = vmatpush1.xpose.msra.mxu0 %v52
    %56 = vmatprep.subr.mxu0 0.0
    %57 = vmatpush1.xpose.msra.mxu0 0.0
    %58 = vmatprep.subr.mxu0 0.0
    %59 = vmatpush1.xpose.msra.mxu0 0.0
    %60 = vmatprep.subr.mxu0 0.0
    %61 = vmatpush1.xpose.msra.mxu0 0.0
    %62 = vmatprep.subr.mxu0 0.0
    %63 = vmatpush1.xpose.msra.mxu0 0.0
    %64 = vmatprep.subr.mxu0 0.0
    %65 = vmatpush1.xpose.msra.mxu0 0.0
    %66 = vmatprep.subr.mxu0 0.0
    %67 = vmatpush1.xpose.msra.mxu0 0.0
    %68 = vmatprep.subr.mxu0 0.0
    %69 = vmatpush1.xpose.msra.mxu0 0.0
    %70 = vmatprep.subr.mxu0 0.0
    %71 = vmatpush1.xpose.msra.mxu0 0.0
    %72 = vmatprep.subr.mxu0 0.0
    %73 = vmatpush1.xpose.msra.mxu0 0.0
    %74 = vmatprep.subr.mxu0 0.0
    %75 = vmatpush1.xpose.msra.mxu0 0.0
    %76 = vmatprep.subr.mxu0 0.0
    %77 = vmatpush1.xpose.msra.mxu0 0.0
    %78 = vmatprep.subr.mxu0 0.0
    %79 = vmatpush1.xpose.msra.mxu0 0.0
    %80 = vmatprep.subr.mxu0 0.0
    %81 = vmatpush1.xpose.msra.mxu0 0.0
    %82 = vmatprep.subr.mxu0 0.0
    %83 = vmatpush1.xpose.msra.mxu0 0.0
    %84 = vmatprep.subr.mxu0 0.0
    %85 = vmatpush1.xpose.msra.mxu0 0.0
    %86 = vmatprep.subr.mxu0 0.0
    %87 = vmatpush1.xpose.msra.mxu0 0.0
    %88 = vmatprep.subr.mxu0 0.0
    %89 = vmatpush1.xpose.msra.mxu0 0.0
    %90 = vmatprep.subr.mxu0 0.0
    %91 = vmatpush1.xpose.msra.mxu0 0.0
    %92 = vmatprep.subr.mxu0 0.0
    %93 = vmatpush1.xpose.msra.mxu0 0.0
    %94 = vmatprep.subr.mxu0 0.0
    %95 = vmatpush1.xpose.msra.mxu0 0.0
    %96 = vmatprep.subr.mxu0 0.0
    %97 = vmatpush1.xpose.msra.mxu0 0.0
    %98 = vmatprep.subr.mxu0 0.0
    %99 = vmatpush1.xpose.msra.mxu0 0.0
    %100 = vmatprep.subr.mxu0 0.0
    %101 = vmatpush1.xpose.msra.mxu0 0.0
    %102 = vmatprep.subr.mxu0 0.0
    %103 = vmatpush1.xpose.msra.mxu0 0.0
    %104 = vmatprep.subr.mxu0 0.0
    %105 = vmatpush1.xpose.msra.mxu0 0.0
    %106 = vmatprep.subr.mxu0 0.0
    %107 = vmatpush1.xpose.msra.mxu0 0.0
    %108 = vmatprep.subr.mxu0 0.0
    %109 = vmatpush1.xpose.msra.mxu0 0.0
    %110 = vmatprep.subr.mxu0 0.0
    %111 = vmatpush1.xpose.msra.mxu0 0.0
    %112 = vmatprep.subr.mxu0 0.0
    %113 = vmatpush1.xpose.msra.mxu0 0.0
    %114 = vmatprep.subr.mxu0 0.0
    %115 = vmatpush1.xpose.msra.mxu0 0.0
    %116 = vmatprep.subr.mxu0 0.0
    %117 = vmatpush1.xpose.msra.mxu0 0.0
    %118 = vmatprep.mubr.f32.mxu0 0.0
    %119 = vmatmul.mubr.f32.gmra.mrb[0].mxu0 %v40
    %v120 = vpop.f32.mrb[0].mxu0
    %v121 = vadd.f32 0.0, %v120
    %v122 = vpop.f32.mrb[0].mxu0
    %123 = vmatprep.mubr.f32.mxu0 0.0
    %124 = vmatmul.mubr.f32.gmra.mrb[0].mxu0 %v43
    %v125 = vpop.f32.mrb[0].mxu0
    %v126 = vadd.f32 0.0, %v125
    %v127 = vpop.f32.mrb[0].mxu0
    %128 = vmatprep.mubr.f32.mxu0 0.0
    %129 = vmatmul.mubr.f32.gmra.mrb[0].mxu0 %v46
    %v130 = vpop.f32.mrb[0].mxu0
    %v131 = vadd.f32 0.0, %v130
    %v132 = vpop.f32.mrb[0].mxu0
    %133 = vmatprep.mubr.f32.mxu0 0.0
    %134 = vmatmul.mubr.f32.gmra.mrb[0].mxu0 %v49
    %v135 = vpop.f32.mrb[0].mxu0
    %v136 = vadd.f32 0.0, %v135
    %v137 = vpop.f32.mrb[0].mxu0
    %138 = vdwg.mxu0
    %v140 = vsel %vm38, %v28, 0
    %v143 = vsel %vm38, %v29, 0
    %v146 = vsel %vm38, %v30, 0
    %v149 = vsel %vm38, %v31, 0
    %v152 = vsel %vm38, %v32, 0
    %154 = vmatprep.subr.mxu0 0.0
    %155 = vmatpush1.xpose.msra.mxu0 %v152
    %156 = vmatprep.subr.mxu0 0.0
    %157 = vmatpush1.xpose.msra.mxu0 0.0
    %158 = vmatprep.subr.mxu0 0.0
    %159 = vmatpush1.xpose.msra.mxu0 0.0
    %160 = vmatprep.subr.mxu0 0.0
    %161 = vmatpush1.xpose.msra.mxu0 0.0
    %162 = vmatprep.subr.mxu0 0.0
    %163 = vmatpush1.xpose.msra.mxu0 0.0
    %164 = vmatprep.subr.mxu0 0.0
    %165 = vmatpush1.xpose.msra.mxu0 0.0
    %166 = vmatprep.subr.mxu0 0.0
    %167 = vmatpush1.xpose.msra.mxu0 0.0
    %168 = vmatprep.subr.mxu0 0.0
    %169 = vmatpush1.xpose.msra.mxu0 0.0
    %170 = vmatprep.subr.mxu0 0.0
    %171 = vmatpush1.xpose.msra.mxu0 0.0
    %172 = vmatprep.subr.mxu0 0.0
    %173 = vmatpush1.xpose.msra.mxu0 0.0
    %174 = vmatprep.subr.mxu0 0.0
    %175 = vmatpush1.xpose.msra.mxu0 0.0
    %176 = vmatprep.subr.mxu0 0.0
    %177 = vmatpush1.xpose.msra.mxu0 0.0
    %178 = vmatprep.subr.mxu0 0.0
    %179 = vmatpush1.xpose.msra.mxu0 0.0
    %180 = vmatprep.subr.mxu0 0.0
    %181 = vmatpush1.xpose.msra.mxu0 0.0
    %182 = vmatprep.subr.mxu0 0.0
    %183 = vmatpush1.xpose.msra.mxu0 0.0
    %184 = vmatprep.subr.mxu0 0.0
    %185 = vmatpush1.xpose.msra.mxu0 0.0
    %186 = vmatprep.subr.mxu0 0.0
    %187 = vmatpush1.xpose.msra.mxu0 0.0
    %188 = vmatprep.subr.mxu0 0.0
    %189 = vmatpush1.xpose.msra.mxu0 0.0
    %190 = vmatprep.subr.mxu0 0.0
    %191 = vmatpush1.xpose.msra.mxu0 0.0
    %192 = vmatprep.subr.mxu0 0.0
    %193 = vmatpush1.xpose.msra.mxu0 0.0
    %194 = vmatprep.subr.mxu0 0.0
    %195 = vmatpush1.xpose.msra.mxu0 0.0
    %196 = vmatprep.subr.mxu0 0.0
    %197 = vmatpush1.xpose.msra.mxu0 0.0
    %198 = vmatprep.subr.mxu0 0.0
    %199 = vmatpush1.xpose.msra.mxu0 0.0
    %200 = vmatprep.subr.mxu0 0.0
    %201 = vmatpush1.xpose.msra.mxu0 0.0
    %202 = vmatprep.subr.mxu0 0.0
    %203 = vmatpush1.xpose.msra.mxu0 0.0
    %204 = vmatprep.subr.mxu0 0.0
    %205 = vmatpush1.xpose.msra.mxu0 0.0
    %206 = vmatprep.subr.mxu0 0.0
    %207 = vmatpush1.xpose.msra.mxu0 0.0
    %208 = vmatprep.subr.mxu0 0.0
    %209 = vmatpush1.xpose.msra.mxu0 0.0
    %210 = vmatprep.subr.mxu0 0.0
    %211 = vmatpush1.xpose.msra.mxu0 0.0
    %212 = vmatprep.subr.mxu0 0.0
    %213 = vmatpush1.xpose.msra.mxu0 0.0
    %214 = vmatprep.subr.mxu0 0.0
    %215 = vmatpush1.xpose.msra.mxu0 0.0
    %216 = vmatprep.subr.mxu0 0.0
    %217 = vmatpush1.xpose.msra.mxu0 0.0
    %218 = vmatprep.mubr.f32.mxu0 0.0
    %219 = vmatmul.mubr.f32.gmra.mrb[0].mxu0 %v140
    %v220 = vpop.f32.mrb[0].mxu0
    %v221 = vadd.f32 %v121, %v220
    %v222 = vpop.f32.mrb[0].mxu0
    %223 = vmatprep.mubr.f32.mxu0 0.0
    %224 = vmatmul.mubr.f32.gmra.mrb[0].mxu0 %v143
    %v225 = vpop.f32.mrb[0].mxu0
    %v226 = vadd.f32 %v126, %v225
    %v227 = vpop.f32.mrb[0].mxu0
    %228 = vmatprep.mubr.f32.mxu0 0.0
    %229 = vmatmul.mubr.f32.gmra.mrb[0].mxu0 %v146
    %v230 = vpop.f32.mrb[0].mxu0
    %v231 = vadd.f32 %v131, %v230
    %v232 = vpop.f32.mrb[0].mxu0
    %233 = vmatprep.mubr.f32.mxu0 0.0
    %234 = vmatmul.mubr.f32.gmra.mrb[0].mxu0 %v149
    %v235 = vpop.f32.mrb[0].mxu0
    %v236 = vadd.f32 %v136, %v235
    %v237 = vpop.f32.mrb[0].mxu0
    %238 = vdwg.mxu0
    %v239 = vld [vmem:[%s4] sm:$0xff]
    %v240 = vld [vmem:[%s4 + $0x8] sm:$0xff]
    %v241 = vld [vmem:[%s4 + $0x10] sm:$0xff]
    %v242 = vld [vmem:[%s4 + $0x18] sm:$0xff]
    %244 = vset.pattern.permute.xlu0 0
    %245 = vperm.xlu0 %244, %v239
    %v246 = vpop.permute.xlu0 %245
    %249 = vset.pattern.permute.xlu0 0
    %250 = vperm.xlu0 %249, %v240
    %v251 = vpop.permute.xlu0 %250
    %254 = vset.pattern.permute.xlu0 0
    %255 = vperm.xlu0 %254, %v241
    %v256 = vpop.permute.xlu0 %255
    %259 = vset.pattern.permute.xlu0 0
    %260 = vperm.xlu0 %259, %v242
    %v261 = vpop.permute.xlu0 %260
    %v263 = vadd.f32 %v221, %v246
    %v264 = vadd.f32 %v226, %v251
    %v265 = vadd.f32 %v231, %v256
    %v266 = vadd.f32 %v236, %v261
    %v267 = vtanh.pop %v263
    %v268 = vtanh.pop %v264
    %v269 = vtanh.pop %v265
    %v270 = vtanh.pop %v266
    %v271 = vld [vmem:[%s5] sm:$0xff]
    %v272 = vld [vmem:[%s5 + $0x8] sm:$0xff]
    %v273 = vld [vmem:[%s5 + $0x10] sm:$0xff]
    %v274 = vld [vmem:[%s5 + $0x18] sm:$0xff]
    %276 = vset.pattern.permute.xlu0 0
    %277 = vperm.xlu0 %276, %v271
    %v278 = vpop.permute.xlu0 %277
    %281 = vset.pattern.permute.xlu0 0
    %282 = vperm.xlu0 %281, %v272
    %v283 = vpop.permute.xlu0 %282
    %286 = vset.pattern.permute.xlu0 0
    %287 = vperm.xlu0 %286, %v273
    %v288 = vpop.permute.xlu0 %287
    %291 = vset.pattern.permute.xlu0 0
    %292 = vperm.xlu0 %291, %v274
    %v293 = vpop.permute.xlu0 %292
    %v295 = vmul.f32 %v267, %v278
    %v296 = vmul.f32 %v268, %v283
    %v297 = vmul.f32 %v269, %v288
    %v298 = vmul.f32 %v270, %v293
    %vm299 = vcmask 64512
    %v300 = vsel %vm299, %v295, 0.0
    %v301 = vsel %vm299, %v296, 0.0
    %v302 = vadd.f32 %v300, %v301
    %v303 = vsel %vm299, %v297, 0.0
    %v304 = vadd.f32 %v302, %v303
    %v305 = vsel %vm299, %v298, 0.0
    %v306 = vadd.f32 %v304, %v305
    %v307 = vrot.slane %v306, 4
    %v308 = vadd.f32 %v306, %v307
    %v309 = vrot.slane %v308, 2
    %v310 = vadd.f32 %v308, %v309
    %v311 = vrot.slane %v310, 1
    %v312 = vadd.f32 %v310, %v311
    %s313 = sld [smem:[#allocation2]]
    %v314 = vstv %s313
    %v315 = vadd.f32 %v312, %v314
    %v316 = vxor.u32 %v315, 2147483648
    %v317 = vmul.f32 %v316, 1.442695
    %v318 = vpow.pop %v317
    %v319 = vadd.f32 %v318, 1.0
    %v320 = vrcp.pop %v319
    %v321 = vmul.f32 1.0, %v320
    %vm322 = vcmask 57344
    %323 = vst.msk [vmem:[#allocation3] sm:$0x1] %vm322, %v321
    // Predicated region
    $region30: #{tpu_custom_call.1} parent=1 // pred_check
      _
    $region31: #{tpu_custom_call.1} parent=1 // pred_check_branch
      %325 = sbr.rel (0) target = $region33
    $region32: #{tpu_custom_call.1} parent=1 // pred_region
      %s327 = ssub.s32 16, 16
      %328 = vsyncadd [#allocation4], %s327
      %s330 = sshll.u32 [#allocation3], 4
      %s331 = int_to_ptr.vmem [resolvable:$true] %s330
      %333 = dma.vmem_to_hbm [thread:$0]  %s331, 16, %s7, [#allocation4]
    $region33: #{tpu_custom_call.1} parent=1 // pred_fallthru
      _
    // Predicated region
    $region34: #{tpu_custom_call.1} parent=1 // pred_check
      _
    $region35: #{tpu_custom_call.1} parent=1 // pred_check_branch
      %335 = sbr.rel (0) target = $region37
    $region36: #{tpu_custom_call.1} parent=1 // pred_region
      %336 = dma.done [#allocation4], 16
    $region37: #{tpu_custom_call.1} parent=1 // pred_fallthru
      _
    %337 = vsyncpa [#allocation4], 1

</llo_original>
